<compile_context>
chip_gen: v7x
topology: tpu7x:2x2x1
jax: 0.10.0
libtpu: 0.0.40
codegen_flags: <defaults>
</compile_context>

<pallas_src>
import functools

import jax
import jax.numpy as jnp
from jax import lax
from jax.experimental import pallas as pl
from jax.experimental.pallas import tpu as pltpu

LANE = 128
_INV_SQRT2 = 0.7071067811865476


def _round_up(a, b):
    return (a + b - 1) // b * b


def _sublane_quantum(dtype):
    # rows per packed vreg sublane group: 8 for f32, 16 for bf16, 32 for int8/fp8
    return max(8, 32 // jnp.dtype(dtype).itemsize)


def _vmem_limits():
    cap = 64 * 1024 * 1024  # assume the smallest (v7x per-TensorCore VMEM) if query fails
    try:
        info = pltpu.get_tpu_info()
        cap = int(getattr(info, "vmem_capacity_bytes", cap)) or cap
    except Exception:
        pass
    budget = int(cap * 0.45)  # what our tiles + resident weights may consume
    limit = int(cap * 0.75)   # scoped VMEM limit requested from the compiler
    return budget, limit


def _choose_row_tile(n_rows, c_pad, f_pad, fc_pad, x_dtype, w_dtype, vmem_budget):
    """Largest sublane-aligned row tile whose working set fits the VMEM budget."""
    xb = jnp.dtype(x_dtype).itemsize
    wb = jnp.dtype(w_dtype).itemsize
    sub = _sublane_quantum(x_dtype)
    # Resident weights (Wc, Wa, Wg, Wd); x2 headroom for pipeline buffering.
    weight_bytes = 2 * (fc_pad * c_pad + 3 * c_pad * f_pad) * wb
    # Per-row cost: double-buffered x/out tiles + f32 intermediates (xf, xn, y, a, g, h).
    per_row = 4 * c_pad * xb + 4 * (3 * c_pad) + 4 * (3 * f_pad)
    avail = vmem_budget - weight_bytes
    if avail < per_row * sub:
        tm = sub
    else:
        tm = (avail // per_row) // sub * sub
    return int(max(sub, min(tm, _round_up(n_rows, sub), 4096)))


def _ffn_kernel(x_ref, cond_ref, wc_ref, wa_ref, wg_ref, wd_ref, o_ref, *, eps, inv_d):
    """Fused AdaRMSNorm -> GEGLU up-proj -> down-proj -> residual, one row tile."""
    x = x_ref[0]                                    # (TM, Cp), input dtype
    xf = x.astype(jnp.float32)

    # AdaRMSNorm adaptive scale: cond @ Wc^T + 1, computed in f32.
    cvec = cond_ref[0].astype(jnp.float32)          # (Fcp, 1)
    s = jnp.sum(cvec * wc_ref[...].astype(jnp.float32),
                axis=0, keepdims=True) + 1.0        # (1, Cp)

    # RMS over the true feature width; 1/D folded into a constant multiply, rsqrt on EUP.
    ms = jnp.sum(xf * xf, axis=-1, keepdims=True) * inv_d       # (TM, 1)
    inv = lax.rsqrt(ms + eps)
    xn = (xf * (s * inv)).astype(x.dtype)                       # single f32 path, one cast

    # GEGLU up-projection (value / gate halves pre-split & pre-transposed in the wrapper).
    a = jnp.dot(xn, wa_ref[...], preferred_element_type=jnp.float32)   # (TM, Fp)
    g = jnp.dot(xn, wg_ref[...], preferred_element_type=jnp.float32)   # (TM, Fp)
    h = a * 0.5 * (1.0 + lax.erf(g * _INV_SQRT2))                      # exact GELU gate
    # Dropout(p=0.0) is an identity.
    # TODO(synk): add PRNG-based dropout masking if a non-zero dropout rate is needed.

    # Down-projection + residual add while the tile is still in VMEM.
    y = jnp.dot(h.astype(x.dtype), wd_ref[...], preferred_element_type=jnp.float32)
    o_ref[0] = (y + xf).astype(o_ref.dtype)


def feed_forward_block_pallas(x, cond, w_cond, w_up, w_down, *, eps=1e-6, row_tile=None):
    """x: [B, C, T, H, W]; cond: [B, Fc]; w_cond: [C, Fc]; w_up: [2*d_ff, C]; w_down: [C, d_ff]."""
    B, C, T, H, W = x.shape
    d_model = C
    two_f, dm = w_up.shape
    d_ff = two_f // 2
    assert dm == d_model and w_down.shape == (d_model, d_ff)
    Fc = w_cond.shape[1]
    assert w_cond.shape[0] == d_model and cond.shape == (B, Fc)

    # 'b c t h w -> b h w t c', then flatten the spatial/temporal axes into rows.
    xr = jnp.transpose(x, (0, 3, 4, 2, 1))          # [B, H, W, T, C]
    N = H * W * T
    x3 = xr.reshape(B, N, C)

    # Lane-dense padding of feature axes.
    Cp = _round_up(C, LANE)
    Fp = _round_up(d_ff, LANE)
    Fcp = _round_up(Fc, LANE)

    budget, vmem_limit = _vmem_limits()
    sub = _sublane_quantum(x.dtype)
    if row_tile is None:
        tm = _choose_row_tile(N, Cp, Fp, Fcp, x.dtype, w_up.dtype, budget)
    else:
        tm = int(max(sub, _round_up(int(row_tile), sub)))
    Np = _round_up(N, tm)

    x3p = jnp.pad(x3, ((0, 0), (0, Np - N), (0, Cp - C)))
    cond3 = jnp.pad(cond[:, :, None], ((0, 0), (0, Fcp - Fc), (0, 0)))      # [B, Fcp, 1]
    wc = jnp.pad(w_cond.T, ((0, Fcp - Fc), (0, Cp - C)))                    # [Fcp, Cp]
    wa = jnp.pad(w_up[:d_ff].T, ((0, Cp - C), (0, Fp - d_ff)))              # [Cp, Fp] value
    wg = jnp.pad(w_up[d_ff:].T, ((0, Cp - C), (0, Fp - d_ff)))              # [Cp, Fp] gate
    wd = jnp.pad(w_down.T, ((0, Fp - d_ff), (0, Cp - C)))                   # [Fp, Cp]

    grid = (B, Np // tm)
    kernel = functools.partial(_ffn_kernel, eps=float(eps), inv_d=1.0 / float(C))

    out3 = pl.pallas_call(
        kernel,
        out_shape=jax.ShapeDtypeStruct((B, Np, Cp), x.dtype),
        grid_spec=pltpu.PrefetchScalarGridSpec(
            num_scalar_prefetch=0,
            grid=grid,
            in_specs=[
                pl.BlockSpec((1, tm, Cp), lambda b, r: (b, r, 0)),   # x rows (rearranged)
                pl.BlockSpec((1, Fcp, 1), lambda b, r: (b, 0, 0)),   # cond for this batch
                pl.BlockSpec((Fcp, Cp), lambda b, r: (0, 0)),        # W_cond^T (resident)
                pl.BlockSpec((Cp, Fp), lambda b, r: (0, 0)),         # W_up value half^T
                pl.BlockSpec((Cp, Fp), lambda b, r: (0, 0)),         # W_up gate half^T
                pl.BlockSpec((Fp, Cp), lambda b, r: (0, 0)),         # W_down^T
            ],
            out_specs=pl.BlockSpec((1, tm, Cp), lambda b, r: (b, r, 0)),
        ),
        compiler_params=pltpu.CompilerParams(
            dimension_semantics=("parallel", "parallel"),
            vmem_limit_bytes=vmem_limit,
        ),
    )(x3p, cond3, wc, wa, wg, wd)

    out = out3[:, :N, :C].reshape(B, H, W, T, C)
    out = jnp.transpose(out, (0, 4, 3, 1, 2))       # 'b h w t c -> b c t h w'
    return out


def feed_forward_block_ref(x, cond, w_cond, w_up, w_down, eps=1e-6):
    """Pure-JAX reference mirroring the PyTorch module."""
    HI = jax.lax.Precision.HIGHEST
    B, C, T, H, W = x.shape
    d_ff = w_down.shape[1]
    skip = x
    xr = jnp.transpose(x, (0, 3, 4, 2, 1))                        # b h w t c
    s = jnp.dot(cond, w_cond.T, precision=HI) + 1.0               # [B, C]
    s = s[:, None, None, None, :].astype(jnp.float32)
    xf = xr.astype(jnp.float32)
    ms = jnp.mean(xf * xf, axis=-1, keepdims=True)
    scale = s * lax.rsqrt(ms + eps)
    xn = xr * scale.astype(xr.dtype)
    u = jnp.dot(xn, w_up.T, precision=HI)                         # [..., 2*d_ff]
    a, g = u[..., :d_ff], u[..., d_ff:]
    h = a * 0.5 * (1.0 + lax.erf(g * _INV_SQRT2))
    y = jnp.dot(h, w_down.T, precision=HI)
    return jnp.transpose(y, (0, 4, 3, 1, 2)) + skip


if __name__ == "__main__":
    key = jax.random.PRNGKey(0)
    kx, kc, kwc, kwu, kwd = jax.random.split(key, 5)

    # Small shapes consistent with the module; d_model/d_ff kept lane-dense (x128).
    B, C, T, H, W = 2, 128, 2, 4, 4          # x: [B, C=d_model, T, H, W]
    Fc, d_ff = 32, 256

    x = jax.random.normal(kx, (B, C, T, H, W), dtype=jnp.float32)
    cond = jax.random.normal(kc, (B, Fc), dtype=jnp.float32)
    # Module init has w_cond and w_down zero-initialized (output == skip); use small
    # non-zero values here so the full fused math path is actually exercised.
    w_cond = 0.02 * jax.random.normal(kwc, (C, Fc), dtype=jnp.float32)
    w_up = (C ** -0.5) * jax.random.normal(kwu, (2 * d_ff, C), dtype=jnp.float32)
    w_down = (d_ff ** -0.5) * jax.random.normal(kwd, (C, d_ff), dtype=jnp.float32)

    out = feed_forward_block_pallas(x, cond, w_cond, w_up, w_down, eps=1e-6)
    out = jax.block_until_ready(out)

    ref = feed_forward_block_ref(x, cond, w_cond, w_up, w_down, eps=1e-6)
    assert out.shape == x.shape and out.dtype == x.dtype
    max_err = float(jnp.max(jnp.abs(out - ref)))
    assert jnp.allclose(out, ref, atol=5e-3, rtol=5e-3), f"max abs err {max_err}"
    print("KERNEL_OK")
</pallas_src>

<mosaic_0001>
module attributes {stable_mosaic.version = 11 : i64} {
  func.func @_ffn_kernel(%arg0: i32, %arg1: i32, %arg2: memref<1x32x128xf32, #tpu.memory_space<vmem>>, %arg3: memref<1x128x1xf32, #tpu.memory_space<vmem>>, %arg4: memref<128x128xf32, #tpu.memory_space<vmem>>, %arg5: memref<128x256xf32, #tpu.memory_space<vmem>>, %arg6: memref<128x256xf32, #tpu.memory_space<vmem>>, %arg7: memref<256x128xf32, #tpu.memory_space<vmem>>, %arg8: memref<1x32x128xf32, #tpu.memory_space<vmem>>) attributes {dimension_semantics = [#tpu.dimension_semantics<parallel>, #tpu.dimension_semantics<parallel>], iteration_bounds = array<i64: 2, 1>, scalar_prefetch = 0 : i64, scratch_operands = 0 : i64, tpu.core_type = #tpu.core_type<tc>, window_params = [{transform_indices = @transform_0, window_bounds = array<i64: 1, 32, 128>}, {transform_indices = @transform_1, window_bounds = array<i64: 1, 128, 1>}, {pipeline_mode = #tpu.pipeline_mode<synchronous>, transform_indices = @transform_2, window_bounds = array<i64: 128, 128>}, {pipeline_mode = #tpu.pipeline_mode<synchronous>, transform_indices = @transform_3, window_bounds = array<i64: 128, 256>}, {pipeline_mode = #tpu.pipeline_mode<synchronous>, transform_indices = @transform_4, window_bounds = array<i64: 128, 256>}, {pipeline_mode = #tpu.pipeline_mode<synchronous>, transform_indices = @transform_5, window_bounds = array<i64: 256, 128>}, {transform_indices = @transform_6, window_bounds = array<i64: 1, 32, 128>}]} {
    %c0 = arith.constant 0 : index
    %c0_0 = arith.constant 0 : index
    %c0_1 = arith.constant 0 : index
    %0 = vector.load %arg2[%c0, %c0_0, %c0_1] : memref<1x32x128xf32, #tpu.memory_space<vmem>>, vector<1x32x128xf32>
    %1 = vector.shape_cast %0 : vector<1x32x128xf32> to vector<32x128xf32>
    %c0_2 = arith.constant 0 : index
    %c0_3 = arith.constant 0 : index
    %c0_4 = arith.constant 0 : index
    %2 = vector.load %arg3[%c0_2, %c0_3, %c0_4] : memref<1x128x1xf32, #tpu.memory_space<vmem>>, vector<1x128x1xf32>
    %3 = vector.shape_cast %2 : vector<1x128x1xf32> to vector<128x1xf32>
    %c0_5 = arith.constant 0 : index
    %c0_6 = arith.constant 0 : index
    %4 = vector.load %arg4[%c0_5, %c0_6] : memref<128x128xf32, #tpu.memory_space<vmem>>, vector<128x128xf32>
    %5 = vector.broadcast %3 : vector<128x1xf32> to vector<128x128xf32>
    %6 = arith.mulf %5, %4 : vector<128x128xf32>
    %cst = arith.constant dense<0.000000e+00> : vector<128xf32>
    %7 = vector.multi_reduction <add>, %6, %cst [0] : vector<128x128xf32> to vector<128xf32>
    %8 = vector.shape_cast %7 : vector<128xf32> to vector<1x128xf32>
    %cst_7 = arith.constant 1.000000e+00 : f32
    %9 = vector.broadcast %cst_7 : f32 to vector<1x128xf32>
    %10 = arith.addf %8, %9 : vector<1x128xf32>
    %11 = arith.mulf %1, %1 : vector<32x128xf32>
    %cst_8 = arith.constant dense<0.000000e+00> : vector<32xf32>
    %12 = vector.multi_reduction <add>, %11, %cst_8 [1] : vector<32x128xf32> to vector<32xf32>
    %13 = vector.shape_cast %12 : vector<32xf32> to vector<32x1xf32>
    %cst_9 = arith.constant 7.812500e-03 : f32
    %14 = vector.broadcast %cst_9 : f32 to vector<32x1xf32>
    %15 = arith.mulf %13, %14 : vector<32x1xf32>
    %cst_10 = arith.constant 9.99999997E-7 : f32
    %16 = vector.broadcast %cst_10 : f32 to vector<32x1xf32>
    %17 = arith.addf %15, %16 : vector<32x1xf32>
    %18 = math.rsqrt %17 : vector<32x1xf32>
    %19 = vector.broadcast %10 : vector<1x128xf32> to vector<32x128xf32>
    %20 = vector.broadcast %18 : vector<32x1xf32> to vector<32x128xf32>
    %21 = arith.mulf %19, %20 : vector<32x128xf32>
    %22 = arith.mulf %1, %21 : vector<32x128xf32>
    %c0_11 = arith.constant 0 : index
    %c0_12 = arith.constant 0 : index
    %23 = vector.load %arg5[%c0_11, %c0_12] : memref<128x256xf32, #tpu.memory_space<vmem>>, vector<128x256xf32>
    %cst_13 = arith.constant dense<0.000000e+00> : vector<32x256xf32>
    %24 = tpu.matmul %22, %23, %cst_13 {dimension_numbers = #tpu.dot_dimension_numbers<[1], [0], [0], [1], [0, 0, 1, 1], [], []>} : vector<32x128xf32>, vector<128x256xf32>, vector<32x256xf32> -> vector<32x256xf32>
    %c0_14 = arith.constant 0 : index
    %c0_15 = arith.constant 0 : index
    %25 = vector.load %arg6[%c0_14, %c0_15] : memref<128x256xf32, #tpu.memory_space<vmem>>, vector<128x256xf32>
    %cst_16 = arith.constant dense<0.000000e+00> : vector<32x256xf32>
    %26 = tpu.matmul %22, %25, %cst_16 {dimension_numbers = #tpu.dot_dimension_numbers<[1], [0], [0], [1], [0, 0, 1, 1], [], []>} : vector<32x128xf32>, vector<128x256xf32>, vector<32x256xf32> -> vector<32x256xf32>
    %cst_17 = arith.constant 5.000000e-01 : f32
    %27 = vector.broadcast %cst_17 : f32 to vector<32x256xf32>
    %28 = arith.mulf %24, %27 : vector<32x256xf32>
    %cst_18 = arith.constant 0.707106769 : f32
    %29 = vector.broadcast %cst_18 : f32 to vector<32x256xf32>
    %30 = arith.mulf %26, %29 : vector<32x256xf32>
    %31 = math.erf %30 : vector<32x256xf32>
    %cst_19 = arith.constant 1.000000e+00 : f32
    %32 = vector.broadcast %cst_19 : f32 to vector<32x256xf32>
    %33 = arith.addf %32, %31 : vector<32x256xf32>
    %34 = arith.mulf %28, %33 : vector<32x256xf32>
    %c0_20 = arith.constant 0 : index
    %c0_21 = arith.constant 0 : index
    %35 = vector.load %arg7[%c0_20, %c0_21] : memref<256x128xf32, #tpu.memory_space<vmem>>, vector<256x128xf32>
    %cst_22 = arith.constant dense<0.000000e+00> : vector<32x128xf32>
    %36 = tpu.matmul %34, %35, %cst_22 {dimension_numbers = #tpu.dot_dimension_numbers<[1], [0], [0], [1], [0, 0, 1, 1], [], []>} : vector<32x256xf32>, vector<256x128xf32>, vector<32x128xf32> -> vector<32x128xf32>
    %37 = arith.addf %36, %1 : vector<32x128xf32>
    %c0_23 = arith.constant 0 : index
    %c0_24 = arith.constant 0 : index
    %c0_25 = arith.constant 0 : index
    %38 = vector.load %arg8[%c0_23, %c0_24, %c0_25] : memref<1x32x128xf32, #tpu.memory_space<vmem>>, vector<1x32x128xf32>
    %39 = vector.shape_cast %38 : vector<1x32x128xf32> to vector<32x128xf32>
    %40 = vector.shape_cast %37 : vector<32x128xf32> to vector<1x32x128xf32>
    tpu.vector_store %arg8[%c0_23, %c0_24, %c0_25], %40 {strides = array<i32>} : memref<1x32x128xf32, #tpu.memory_space<vmem>>, vector<1x32x128xf32>,
    return
  }
  func.func @transform_0(%arg0: i32, %arg1: i32) -> (i32, i32, i32) {
    %c0_i32 = arith.constant 0 : i32
    %c0_i32_0 = arith.constant 0 : i32
    return %arg0, %arg1, %c0_i32 : i32, i32, i32
  }
  func.func @transform_1(%arg0: i32, %arg1: i32) -> (i32, i32, i32) {
    %c0_i32 = arith.constant 0 : i32
    %c0_i32_0 = arith.constant 0 : i32
    %c0_i32_1 = arith.constant 0 : i32
    return %arg0, %c0_i32, %c0_i32_0 : i32, i32, i32
  }
  func.func @transform_2(%arg0: i32, %arg1: i32) -> (i32, i32) {
    %c0_i32 = arith.constant 0 : i32
    %c0_i32_0 = arith.constant 0 : i32
    %c0_i32_1 = arith.constant 0 : i32
    return %c0_i32, %c0_i32_0 : i32, i32
  }
  func.func @transform_3(%arg0: i32, %arg1: i32) -> (i32, i32) {
    %c0_i32 = arith.constant 0 : i32
    %c0_i32_0 = arith.constant 0 : i32
    %c0_i32_1 = arith.constant 0 : i32
    return %c0_i32, %c0_i32_0 : i32, i32
  }
  func.func @transform_4(%arg0: i32, %arg1: i32) -> (i32, i32) {
    %c0_i32 = arith.constant 0 : i32
    %c0_i32_0 = arith.constant 0 : i32
    %c0_i32_1 = arith.constant 0 : i32
    return %c0_i32, %c0_i32_0 : i32, i32
  }
  func.func @transform_5(%arg0: i32, %arg1: i32) -> (i32, i32) {
    %c0_i32 = arith.constant 0 : i32
    %c0_i32_0 = arith.constant 0 : i32
    %c0_i32_1 = arith.constant 0 : i32
    return %c0_i32, %c0_i32_0 : i32, i32
  }
  func.func @transform_6(%arg0: i32, %arg1: i32) -> (i32, i32, i32) {
    %c0_i32 = arith.constant 0 : i32
    %c0_i32_0 = arith.constant 0 : i32
    return %arg0, %arg1, %c0_i32 : i32, i32, i32
  }
}

</mosaic_0001>

<llo_original>
// kernel: tpu_custom_call.1
$region0: #{tpu_custom_call.1}
  #allocation0 [shape = 'u32[]', space=smem, size = 0x4, offset = 0x4, fixed_abs, tag = 'smem constant byte address 0x4 - core index']
  #allocation1 [shape = 'u32[144,128]{1,0:T(1,128)}', space=vmem, size = 0x12000, scoped, tag = 'internal scratch']
  %s0 = inlined_call_operand.hbm [shape: f32[2,32,128], index: 0, kind: input, shape index: {}]
  %s1 = inlined_call_operand.vmem [shape: f32[2,128,1], index: 1, kind: input, shape index: {}]
  %s2 = inlined_call_operand.hbm [shape: f32[128,128], index: 2, kind: input, shape index: {}]
  %s3 = inlined_call_operand.vmem [shape: f32[128,256], index: 3, kind: input, shape index: {}]
  %s4 = inlined_call_operand.hbm [shape: f32[128,256], index: 4, kind: input, shape index: {}]
  %s5 = inlined_call_operand.hbm [shape: f32[256,128], index: 5, kind: input, shape index: {}]
  %s6 = inlined_call_operand.hbm [shape: f32[2,32,128], index: 6, kind: output, shape index: {}]
  %s7 = sld [smem:[#allocation0]]
  $region73: #{tpu_custom_call.1} parent=0
    _
  %s9 = ssub.s32 1, %s7
  %s10 = scalar_select 0, %s9, %s7
  $region1: #{tpu_custom_call.1} parent=0
    #allocation2 [shape = 'u8[32768]{0}', space=vmem, size = 0x8000, scoped, tag = 'input window, operand 0']
    #allocation3 [shape = 's32[2]{0}', space=sflag, size = 0x8, scoped, tag = 'scoped memory for tpu_custom_call.1']
    #allocation4 [shape = 's32[2]{0}', space=sflag, size = 0x8, scoped, tag = 'scoped memory for tpu_custom_call.1']
    #allocation5 [shape = 'u8[65536]{0}', space=vmem, size = 0x10000, scoped, tag = 'input window, operand 2, single buffered']
    #allocation6 [shape = 's32[1]{0}', space=sflag, size = 0x4, scoped, tag = 'scoped memory for tpu_custom_call.1']
    #allocation7 [shape = 'u8[131072]{0}', space=vmem, size = 0x20000, scoped, tag = 'input window, operand 4, single buffered']
    #allocation8 [shape = 'u8[131072]{0}', space=vmem, size = 0x20000, scoped, tag = 'input window, operand 5, single buffered']
    #allocation9 [shape = 's32[1]{0}', space=sflag, size = 0x4, scoped, tag = 'scoped memory for tpu_custom_call.1']
    #allocation10 [shape = 'u8[32768]{0}', space=vmem, size = 0x8000, scoped, tag = 'output window, operand 0']
    %11 = vsyncpa [#allocation3], 0
    %s12 = scalar_lea.sflag [#allocation3], 1
    %13 = vsyncpa %s12, 0
    %14 = vsyncpa [#allocation6], 0
    %15 = vsyncpa [#allocation9], 0
    %16 = vsyncpa [#allocation4], 0
    %s17 = scalar_lea.sflag [#allocation4], 1
    %18 = vsyncpa %s17, 0
    loop: start=0, step=1, limit=4
    $region2: #{tpu_custom_call.1} parent=1 // loop_pre_header
      _
    $region3: #{tpu_custom_call.1} parent=1 // loop_header
      %s20 = sphi 0, %s24
      %p21 = scmp.ge.s32.totalorder %s20, 4
      %s27 = sphi 0, %s39
      %s28 = sphi 0, %s35
      %s29 = sphi 0, %s27
      %s30 = sphi 0, %s28
      %s31 = sphi 0, %s29
      %s32 = sphi 0, %s30
      %s44 = sphi 0, %s46
      %s47 = sphi 0, %s44
      %s48 = sphi 0, %s47
      %s64 = sphi 0, %s48
      %s70 = sphi 0, %s72
      %s73 = sphi 0, %s70
      %s74 = sphi 0, %s73
      %s90 = sphi 0, %s74
      %s94 = sphi 0, %s94
      %s96 = sphi 0, %s94
      %s97 = sphi 0, %s96
      %s111 = sphi 0, %s97
      %s115 = sphi 0, %s115
      %s117 = sphi 0, %s115
      %s118 = sphi 0, %s117
      %s132 = sphi 0, %s118
      %s136 = sphi 0, %s136
      %s138 = sphi 0, %s136
      %s139 = sphi 0, %s138
      %s153 = sphi 0, %s139
      %s157 = sphi 0, %s157
      %s159 = sphi 0, %s157
      %s160 = sphi 0, %s159
      %s174 = sphi 0, %s160
      %s182 = sphi 0, %s184
      %s185 = sphi 0, %s182
      %s186 = sphi 0, %s185
      %s202 = sphi 0, %s186
    $region4: #{tpu_custom_call.1} parent=1 // loop_header_branch
      %23 = sbr.rel (%p21) target = $region8
    $region5: #{tpu_custom_call.1} parent=1 // loop_body
      %s25 = ssub.s32 %s20, 1
      %s26 = ssub.s32 %s20, 2
      %s33 = sadd.s32 1, %s28
      %p34 = scmp.ge.s32.totalorder %s33, 1
      %s35 = scalar_select %p34, 0, %s33
      %s36 = sadd.s32 1, %s27
      %s37 = scalar_select %p34, %s36, %s27
      %p38 = scmp.ge.s32.totalorder %s37, 2
      %s39 = scalar_select %p38, 0, %s37
      %s40 = ssub.s32 %s27, %s39
      %s41 = ssub.s32 %s28, %s35
      %s42 = sor.u32 %s40, %s41
      %p43 = scmp.eq.s32.totalorder %s42, 0
      %s45 = sadd.s32 %s44, 1
      %s46 = scalar_select %p43, %s44, %s45
      %p49 = pneg %p43
      %p50 = scmp.eq.s32.totalorder %s20, 1
      %p51 = por %p49, %p50
      %p52 = scmp.ne.s32.totalorder %s44, %s47
      %p53 = scmp.eq.s32.totalorder %s20, 0
      %p54 = por %p52, %p53
      %p55 = scmp.ne.s32.totalorder %s44, %s47
      %p56 = scmp.eq.s32.totalorder %s25, 1
      %p57 = por %p55, %p56
      %p58 = scmp.ne.s32.totalorder %s47, %s48
      %p59 = scmp.eq.s32.totalorder %s25, 0
      %p60 = por %p58, %p59
      %p61 = scmp.ne.s32.totalorder %s47, %s48
      %p62 = scmp.eq.s32.totalorder %s26, 1
      %p63 = por %p61, %p62
      %p65 = scmp.ne.s32.totalorder %s48, %s64
      %p66 = scmp.eq.s32.totalorder %s26, 0
      %p67 = por %p65, %p66
      %s68 = ssub.s32 %s27, %s39
      %p69 = scmp.eq.s32.totalorder %s68, 0
      %s71 = sadd.s32 %s70, 1
      %s72 = scalar_select %p69, %s70, %s71
      %p75 = pneg %p69
      %p76 = scmp.eq.s32.totalorder %s20, 1
      %p77 = por %p75, %p76
      %p78 = scmp.ne.s32.totalorder %s70, %s73
      %p79 = scmp.eq.s32.totalorder %s20, 0
      %p80 = por %p78, %p79
      %p81 = scmp.ne.s32.totalorder %s70, %s73
      %p82 = scmp.eq.s32.totalorder %s25, 1
      %p83 = por %p81, %p82
      %p84 = scmp.ne.s32.totalorder %s73, %s74
      %p85 = scmp.eq.s32.totalorder %s25, 0
      %p86 = por %p84, %p85
      %p87 = scmp.ne.s32.totalorder %s73, %s74
      %p88 = scmp.eq.s32.totalorder %s26, 1
      %p89 = por %p87, %p88
      %p91 = scmp.ne.s32.totalorder %s74, %s90
      %p92 = scmp.eq.s32.totalorder %s26, 0
      %p93 = por %p91, %p92
      %s95 = sadd.s32 %s94, 1
      %p98 = scmp.eq.s32.totalorder %s20, 1
      %p99 = scmp.ne.s32.totalorder %s94, %s96
      %p100 = scmp.eq.s32.totalorder %s20, 0
      %p101 = por %p99, %p100
      %p102 = scmp.ne.s32.totalorder %s94, %s96
      %p103 = scmp.eq.s32.totalorder %s25, 1
      %p104 = por %p102, %p103
      %p105 = scmp.ne.s32.totalorder %s96, %s97
      %p106 = scmp.eq.s32.totalorder %s25, 0
      %p107 = por %p105, %p106
      %p108 = scmp.ne.s32.totalorder %s96, %s97
      %p109 = scmp.eq.s32.totalorder %s26, 1
      %p110 = por %p108, %p109
      %p112 = scmp.ne.s32.totalorder %s97, %s111
      %p113 = scmp.eq.s32.totalorder %s26, 0
      %p114 = por %p112, %p113
      %s116 = sadd.s32 %s115, 1
      %p119 = scmp.eq.s32.totalorder %s20, 1
      %p120 = scmp.ne.s32.totalorder %s115, %s117
      %p121 = scmp.eq.s32.totalorder %s20, 0
      %p122 = por %p120, %p121
      %p123 = scmp.ne.s32.totalorder %s115, %s117
      %p124 = scmp.eq.s32.totalorder %s25, 1
      %p125 = por %p123, %p124
      %p126 = scmp.ne.s32.totalorder %s117, %s118
      %p127 = scmp.eq.s32.totalorder %s25, 0
      %p128 = por %p126, %p127
      %p129 = scmp.ne.s32.totalorder %s117, %s118
      %p130 = scmp.eq.s32.totalorder %s26, 1
      %p131 = por %p129, %p130
      %p133 = scmp.ne.s32.totalorder %s118, %s132
      %p134 = scmp.eq.s32.totalorder %s26, 0
      %p135 = por %p133, %p134
      %s137 = sadd.s32 %s136, 1
      %p140 = scmp.eq.s32.totalorder %s20, 1
      %p141 = scmp.ne.s32.totalorder %s136, %s138
      %p142 = scmp.eq.s32.totalorder %s20, 0
      %p143 = por %p141, %p142
      %p144 = scmp.ne.s32.totalorder %s136, %s138
      %p145 = scmp.eq.s32.totalorder %s25, 1
      %p146 = por %p144, %p145
      %p147 = scmp.ne.s32.totalorder %s138, %s139
      %p148 = scmp.eq.s32.totalorder %s25, 0
      %p149 = por %p147, %p148
      %p150 = scmp.ne.s32.totalorder %s138, %s139
      %p151 = scmp.eq.s32.totalorder %s26, 1
      %p152 = por %p150, %p151
      %p154 = scmp.ne.s32.totalorder %s139, %s153
      %p155 = scmp.eq.s32.totalorder %s26, 0
      %p156 = por %p154, %p155
      %s158 = sadd.s32 %s157, 1
      %p161 = scmp.eq.s32.totalorder %s20, 1
      %p162 = scmp.ne.s32.totalorder %s157, %s159
      %p163 = scmp.eq.s32.totalorder %s20, 0
      %p164 = por %p162, %p163
      %p165 = scmp.ne.s32.totalorder %s157, %s159
      %p166 = scmp.eq.s32.totalorder %s25, 1
      %p167 = por %p165, %p166
      %p168 = scmp.ne.s32.totalorder %s159, %s160
      %p169 = scmp.eq.s32.totalorder %s25, 0
      %p170 = por %p168, %p169
      %p171 = scmp.ne.s32.totalorder %s159, %s160
      %p172 = scmp.eq.s32.totalorder %s26, 1
      %p173 = por %p171, %p172
      %p175 = scmp.ne.s32.totalorder %s160, %s174
      %p176 = scmp.eq.s32.totalorder %s26, 0
      %p177 = por %p175, %p176
      %s178 = ssub.s32 %s27, %s39
      %s179 = ssub.s32 %s28, %s35
      %s180 = sor.u32 %s178, %s179
      %p181 = scmp.eq.s32.totalorder %s180, 0
      %s183 = sadd.s32 %s182, 1
      %s184 = scalar_select %p181, %s182, %s183
      %p187 = pneg %p181
      %p188 = scmp.eq.s32.totalorder %s20, 1
      %p189 = por %p187, %p188
      %p190 = scmp.ne.s32.totalorder %s182, %s185
      %p191 = scmp.eq.s32.totalorder %s20, 0
      %p192 = por %p190, %p191
      %p193 = scmp.ne.s32.totalorder %s182, %s185
      %p194 = scmp.eq.s32.totalorder %s25, 1
      %p195 = por %p193, %p194
      %p196 = scmp.ne.s32.totalorder %s185, %s186
      %p197 = scmp.eq.s32.totalorder %s25, 0
      %p198 = por %p196, %p197
      %p199 = scmp.ne.s32.totalorder %s185, %s186
      %p200 = scmp.eq.s32.totalorder %s26, 1
      %p201 = por %p199, %p200
      %p203 = scmp.ne.s32.totalorder %s186, %s202
      %p204 = scmp.eq.s32.totalorder %s26, 0
      %p205 = por %p203, %p204
      %p206 = scmp.le.s32.totalorder 1, %s20
      %p207 = scmp.lt.s32.totalorder %s20, 3
      %p208 = pnand %p206, %p207
      %p209 = pneg %p208
      // Predicated region
      $region9: #{tpu_custom_call.1} parent=5 // pred_check
        _
      $region10: #{tpu_custom_call.1} parent=5 // pred_check_branch
        %211 = sbr.rel (%p208) target = $region12
      $region11: #{tpu_custom_call.1} parent=5 // pred_region
        %s212 = ssub.s32 %s20, 1
        // Predicated region
        $region13: #{tpu_custom_call.1} parent=11 // pred_check
          %p213 = pneg %p107
        $region14: #{tpu_custom_call.1} parent=11 // pred_check_branch
          %215 = sbr.rel (%p213) target = $region16
        $region15: #{tpu_custom_call.1} parent=11 // pred_region
          %s217 = ssub.s32 2048, 2048
          %218 = vsyncadd [#allocation6], %s217
          %s219 = sshll.u32 [#allocation5], 4
          %s220 = int_to_ptr.vmem [resolvable:$true] %s219
          %225 = dma.hbm_to_vmem [thread:$0]  %s2, 2048, %s220, [#allocation6], 128, 128, 8
        $region16: #{tpu_custom_call.1} parent=11 // pred_fallthru
          _
        // Predicated region
        $region17: #{tpu_custom_call.1} parent=11 // pred_check
          %p226 = pneg %p128
        $region18: #{tpu_custom_call.1} parent=11 // pred_check_branch
          %228 = sbr.rel (%p226) target = $region20
        $region19: #{tpu_custom_call.1} parent=11 // pred_region
          _
        $region20: #{tpu_custom_call.1} parent=11 // pred_fallthru
          _
        // Predicated region
        $region21: #{tpu_custom_call.1} parent=11 // pred_check
          %p229 = pneg %p149
        $region22: #{tpu_custom_call.1} parent=11 // pred_check_branch
          %231 = sbr.rel (%p229) target = $region24
        $region23: #{tpu_custom_call.1} parent=11 // pred_region
          %s233 = ssub.s32 4096, 4096
          %234 = vsyncadd [#allocation6], %s233
          %s235 = sshll.u32 [#allocation7], 4
          %s236 = int_to_ptr.vmem [resolvable:$true] %s235
          %241 = dma.hbm_to_vmem [thread:$0]  %s4, 4096, %s236, [#allocation6], 256, 256, 16
        $region24: #{tpu_custom_call.1} parent=11 // pred_fallthru
          _
        // Predicated region
        $region25: #{tpu_custom_call.1} parent=11 // pred_check
          %p242 = pneg %p170
        $region26: #{tpu_custom_call.1} parent=11 // pred_check_branch
          %244 = sbr.rel (%p242) target = $region28
        $region27: #{tpu_custom_call.1} parent=11 // pred_region
          %s246 = ssub.s32 4096, 4096
          %247 = vsyncadd [#allocation9], %s246
          %s248 = sshll.u32 [#allocation8], 4
          %s249 = int_to_ptr.vmem [resolvable:$true] %s248
          %254 = dma.hbm_to_vmem [thread:$0]  %s5, 4096, %s249, [#allocation9], 128, 128, 8
        $region28: #{tpu_custom_call.1} parent=11 // pred_fallthru
          _
      $region12: #{tpu_custom_call.1} parent=5 // pred_fallthru
        _
      %p255 = scmp.lt.s32.totalorder %s20, 2
      // Predicated region
      $region29: #{tpu_custom_call.1} parent=5 // pred_check
        %p256 = pneg %p255
      $region30: #{tpu_custom_call.1} parent=5 // pred_check_branch
        %258 = sbr.rel (%p256) target = $region32
      $region31: #{tpu_custom_call.1} parent=5 // pred_region
        // Predicated region
        $region33: #{tpu_custom_call.1} parent=31 // pred_check
          %p259 = pneg %p54
        $region34: #{tpu_custom_call.1} parent=31 // pred_check_branch
          %261 = sbr.rel (%p259) target = $region36
        $region35: #{tpu_custom_call.1} parent=31 // pred_region
          %s262 = sand.u32 %s44, 1
          %s263 = scalar_lea.sflag [#allocation3], %s262
          %s264 = sand.u32 %s44, 1
          %s265 = smul.addr %s264, 32
          %s266 = scalar_lea.vmem [#allocation2], %s265
          %s267 = smul.u32 4, %s28
          %s269 = ssub.s32 512, 512
          %270 = vsyncadd %s263, %s269
          %s271 = smul.addr %s27, 4
          %s272 = sadd.s32 %s267, %s271
          %s273 = smul.addr %s272, 128
          %s274 = scalar_lea.hbm %s0, %s273
          %s275 = sshll.u32 %s266, 4
          %s276 = int_to_ptr.vmem [resolvable:$true] %s275
          %281 = dma.hbm_to_vmem [thread:$0]  %s274, 512, %s276, %s263, 128, 128, 8
        $region36: #{tpu_custom_call.1} parent=31 // pred_fallthru
          _
        // Predicated region
        $region37: #{tpu_custom_call.1} parent=31 // pred_check
          %p282 = pneg %p80
        $region38: #{tpu_custom_call.1} parent=31 // pred_check_branch
          %284 = sbr.rel (%p282) target = $region40
        $region39: #{tpu_custom_call.1} parent=31 // pred_region
          %p285 = scmp.lt.s32.totalorder %s27, 1
          %s286 = scalar_select %p285, %s27, 1
          %s287 = smul.addr %s286, 16
          %s288 = smul.addr %s287, 8
          %s289 = scalar_lea.vmem %s1, %s288
        $region40: #{tpu_custom_call.1} parent=31 // pred_fallthru
          _
      $region32: #{tpu_custom_call.1} parent=5 // pred_fallthru
        _
      %p290 = scmp.le.s32.totalorder 1, %s20
      %p291 = scmp.lt.s32.totalorder %s20, 3
      %p292 = pnand %p290, %p291
      %p293 = pneg %p292
      // Predicated region
      $region41: #{tpu_custom_call.1} parent=5 // pred_check
        _
      $region42: #{tpu_custom_call.1} parent=5 // pred_check_branch
        %295 = sbr.rel (%p292) target = $region44
      $region43: #{tpu_custom_call.1} parent=5 // pred_region
        %s296 = ssub.s32 %s20, 1
        %s297 = sand.u32 %s47, 1
        %s298 = scalar_lea.sflag [#allocation3], %s297
        %s299 = sand.u32 %s47, 1
        %s300 = smul.addr %s299, 32
        %s301 = scalar_lea.vmem [#allocation2], %s300
        // Predicated region
        $region45: #{tpu_custom_call.1} parent=43 // pred_check
          %p302 = pneg %p60
        $region46: #{tpu_custom_call.1} parent=43 // pred_check_branch
          %304 = sbr.rel (%p302) target = $region48
        $region47: #{tpu_custom_call.1} parent=43 // pred_region
          %305 = dma.done %s298, 512
        $region48: #{tpu_custom_call.1} parent=43 // pred_fallthru
          _
        // Predicated region
        $region49: #{tpu_custom_call.1} parent=43 // pred_check
          %p306 = pneg %p107
        $region50: #{tpu_custom_call.1} parent=43 // pred_check_branch
          %308 = sbr.rel (%p306) target = $region52
        $region51: #{tpu_custom_call.1} parent=43 // pred_region
          %309 = dma.done [#allocation6], 2048
        $region52: #{tpu_custom_call.1} parent=43 // pred_fallthru
          _
        // Predicated region
        $region53: #{tpu_custom_call.1} parent=43 // pred_check
          %p310 = pneg %p149
        $region54: #{tpu_custom_call.1} parent=43 // pred_check_branch
          %312 = sbr.rel (%p310) target = $region56
        $region55: #{tpu_custom_call.1} parent=43 // pred_region
          %313 = dma.done [#allocation6], 4096
        $region56: #{tpu_custom_call.1} parent=43 // pred_fallthru
          _
        // Predicated region
        $region57: #{tpu_custom_call.1} parent=43 // pred_check
          %p314 = pneg %p170
        $region58: #{tpu_custom_call.1} parent=43 // pred_check_branch
          %316 = sbr.rel (%p314) target = $region60
        $region59: #{tpu_custom_call.1} parent=43 // pred_region
          %317 = dma.done [#allocation9], 4096
        $region60: #{tpu_custom_call.1} parent=43 // pred_fallthru
          _
        %s318 = sand.u32 %s47, 1
        %s319 = scalar_lea.sflag [#allocation3], %s318
        %s320 = sand.u32 %s47, 1
        %s321 = smul.addr %s320, 32
        %s322 = scalar_lea.vmem [#allocation2], %s321
        %p323 = pneg %p60
        %p324 = pneg %p57
        %p325 = scmp.lt.s32.totalorder %s29, 1
        %s326 = scalar_select %p325, %s29, 1
        %s327 = smul.addr %s326, 16
        %s328 = smul.addr %s327, 8
        %s329 = scalar_lea.vmem %s1, %s328
        %p330 = pneg %p86
        %p331 = pneg %p83
        %p332 = pneg %p107
        %p333 = pneg %p104
        %p334 = pneg %p128
        %p335 = pneg %p125
        %p336 = pneg %p149
        %p337 = pneg %p146
        %p338 = pneg %p170
        %p339 = pneg %p167
        %p340 = pneg %p198
        %p341 = pneg %p195
        %s342 = sand.u32 %s185, 1
        %s343 = scalar_lea.sflag [#allocation4], %s342
        %s344 = sand.u32 %s185, 1
        %s345 = smul.addr %s344, 32
        %s346 = scalar_lea.vmem [#allocation10], %s345
        %s347 = smul.u32 4, %s30
        %p348 = scmp.lt.s32.totalorder %s29, 1
        %s349 = scalar_select %p348, %s29, 1
        %s350 = smul.addr %s349, 16
        %s351 = smul.addr %s350, 8
        %s352 = scalar_lea.vmem %s1, %s351
        %s353 = smul.u32 4, %s30
        %v354 = vld [vmem:[%s301] sm:$0xff]
        %v355 = vld [vmem:[%s301 + $0x8] sm:$0xff]
        %v356 = vld [vmem:[%s301 + $0x10] sm:$0xff]
        %v357 = vld [vmem:[%s301 + $0x18] sm:$0xff]
        %v358 = vld [vmem:[%s352] sm:$0xff]
        %v359 = vld [vmem:[%s352 + $0x8] sm:$0xff]
        %v360 = vld [vmem:[%s352 + $0x10] sm:$0xff]
        %v361 = vld [vmem:[%s352 + $0x18] sm:$0xff]
        %v362 = vld [vmem:[%s352 + $0x20] sm:$0xff]
        %v363 = vld [vmem:[%s352 + $0x28] sm:$0xff]
        %v364 = vld [vmem:[%s352 + $0x30] sm:$0xff]
        %v365 = vld [vmem:[%s352 + $0x38] sm:$0xff]
        %v366 = vld [vmem:[%s352 + $0x40] sm:$0xff]
        %v367 = vld [vmem:[%s352 + $0x48] sm:$0xff]
        %v368 = vld [vmem:[%s352 + $0x50] sm:$0xff]
        %v369 = vld [vmem:[%s352 + $0x58] sm:$0xff]
        %v370 = vld [vmem:[%s352 + $0x60] sm:$0xff]
        %v371 = vld [vmem:[%s352 + $0x68] sm:$0xff]
        %v372 = vld [vmem:[%s352 + $0x70] sm:$0xff]
        %v373 = vld [vmem:[%s352 + $0x78] sm:$0xff]
        %v374 = vld [vmem:[#allocation5] sm:$0xff]
        %v375 = vld [vmem:[#allocation5 + $0x8] sm:$0xff]
        %v376 = vld [vmem:[#allocation5 + $0x10] sm:$0xff]
        %v377 = vld [vmem:[#allocation5 + $0x18] sm:$0xff]
        %v378 = vld [vmem:[#allocation5 + $0x20] sm:$0xff]
        %v379 = vld [vmem:[#allocation5 + $0x28] sm:$0xff]
        %v380 = vld [vmem:[#allocation5 + $0x30] sm:$0xff]
        %v381 = vld [vmem:[#allocation5 + $0x38] sm:$0xff]
        %v382 = vld [vmem:[#allocation5 + $0x40] sm:$0xff]
        %v383 = vld [vmem:[#allocation5 + $0x48] sm:$0xff]
        %v384 = vld [vmem:[#allocation5 + $0x50] sm:$0xff]
        %v385 = vld [vmem:[#allocation5 + $0x58] sm:$0xff]
        %v386 = vld [vmem:[#allocation5 + $0x60] sm:$0xff]
        %v387 = vld [vmem:[#allocation5 + $0x68] sm:$0xff]
        %v388 = vld [vmem:[#allocation5 + $0x70] sm:$0xff]
        %v389 = vld [vmem:[#allocation5 + $0x78] sm:$0xff]
        %391 = vset.pattern.permute.xlu0 0
        %392 = vperm.xlu0 %391, %v358
        %v393 = vpop.permute.xlu0 %392
        %396 = vset.pattern.permute.xlu0 0
        %397 = vperm.xlu0 %396, %v359
        %v398 = vpop.permute.xlu0 %397
        %401 = vset.pattern.permute.xlu0 0
        %402 = vperm.xlu0 %401, %v360
        %v403 = vpop.permute.xlu0 %402
        %406 = vset.pattern.permute.xlu0 0
        %407 = vperm.xlu0 %406, %v361
        %v408 = vpop.permute.xlu0 %407
        %411 = vset.pattern.permute.xlu0 0
        %412 = vperm.xlu0 %411, %v362
        %v413 = vpop.permute.xlu0 %412
        %416 = vset.pattern.permute.xlu0 0
        %417 = vperm.xlu0 %416, %v363
        %v418 = vpop.permute.xlu0 %417
        %421 = vset.pattern.permute.xlu0 0
        %422 = vperm.xlu0 %421, %v364
        %v423 = vpop.permute.xlu0 %422
        %426 = vset.pattern.permute.xlu0 0
        %427 = vperm.xlu0 %426, %v365
        %v428 = vpop.permute.xlu0 %427
        %431 = vset.pattern.permute.xlu0 0
        %432 = vperm.xlu0 %431, %v366
        %v433 = vpop.permute.xlu0 %432
        %436 = vset.pattern.permute.xlu0 0
        %437 = vperm.xlu0 %436, %v367
        %v438 = vpop.permute.xlu0 %437
        %441 = vset.pattern.permute.xlu0 0
        %442 = vperm.xlu0 %441, %v368
        %v443 = vpop.permute.xlu0 %442
        %446 = vset.pattern.permute.xlu0 0
        %447 = vperm.xlu0 %446, %v369
        %v448 = vpop.permute.xlu0 %447
        %451 = vset.pattern.permute.xlu0 0
        %452 = vperm.xlu0 %451, %v370
        %v453 = vpop.permute.xlu0 %452
        %456 = vset.pattern.permute.xlu0 0
        %457 = vperm.xlu0 %456, %v371
        %v458 = vpop.permute.xlu0 %457
        %461 = vset.pattern.permute.xlu0 0
        %462 = vperm.xlu0 %461, %v372
        %v463 = vpop.permute.xlu0 %462
        %466 = vset.pattern.permute.xlu0 0
        %467 = vperm.xlu0 %466, %v373
        %v468 = vpop.permute.xlu0 %467
        %v470 = vmul.f32 %v393, %v374
        %v471 = vmul.f32 %v398, %v375
        %v472 = vmul.f32 %v403, %v376
        %v473 = vmul.f32 %v408, %v377
        %v474 = vmul.f32 %v413, %v378
        %v475 = vmul.f32 %v418, %v379
        %v476 = vmul.f32 %v423, %v380
        %v477 = vmul.f32 %v428, %v381
        %v478 = vmul.f32 %v433, %v382
        %v479 = vmul.f32 %v438, %v383
        %v480 = vmul.f32 %v443, %v384
        %v481 = vmul.f32 %v448, %v385
        %v482 = vmul.f32 %v453, %v386
        %v483 = vmul.f32 %v458, %v387
        %v484 = vmul.f32 %v463, %v388
        %v485 = vmul.f32 %v468, %v389
        %v486 = vadd.f32 %v470, %v471
        %v487 = vadd.f32 %v486, %v472
        %v488 = vadd.f32 %v487, %v473
        %v489 = vadd.f32 %v488, %v474
        %v490 = vadd.f32 %v489, %v475
        %v491 = vadd.f32 %v490, %v476
        %v492 = vadd.f32 %v491, %v477
        %v493 = vadd.f32 %v492, %v478
        %v494 = vadd.f32 %v493, %v479
        %v495 = vadd.f32 %v494, %v480
        %v496 = vadd.f32 %v495, %v481
        %v497 = vadd.f32 %v496, %v482
        %v498 = vadd.f32 %v497, %v483
        %v499 = vadd.f32 %v498, %v484
        %v500 = vadd.f32 %v499, %v485
        %v501 = vrot.slane %v500, 4
        %v502 = vadd.f32 %v500, %v501
        %v503 = vrot.slane %v502, 2
        %v504 = vadd.f32 %v502, %v503
        %v505 = vrot.slane %v504, 1
        %v506 = vadd.f32 %v504, %v505
        %v507 = vadd.f32 %v506, 1.0
        %v508 = vmul.f32 %v354, %v354
        %v509 = vmul.f32 %v355, %v355
        %v510 = vmul.f32 %v356, %v356
        %v511 = vmul.f32 %v357, %v357
        %512 = vadd.xlane.f32.xlu0 %v508
        %v513 = vpop.xlane.xlu0 %512
        %514 = vadd.xlane.f32.xlu0 %v509
        %v515 = vpop.xlane.xlu0 %514
        %516 = vadd.xlane.f32.xlu0 %v510
        %v517 = vpop.xlane.xlu0 %516
        %518 = vadd.xlane.f32.xlu0 %v511
        %v519 = vpop.xlane.xlu0 %518
        %v520 = vmul.f32 %v513, 0.0078125
        %v521 = vmul.f32 %v515, 0.0078125
        %v522 = vmul.f32 %v517, 0.0078125
        %v523 = vmul.f32 %v519, 0.0078125
        %v524 = vadd.f32 %v520, 1e-06
        %v525 = vadd.f32 %v521, 1e-06
        %v526 = vadd.f32 %v522, 1e-06
        %v527 = vadd.f32 %v523, 1e-06
        %v528 = vrsqrt.pop %v524
        %v529 = vrsqrt.pop %v525
        %v530 = vrsqrt.pop %v526
        %v531 = vrsqrt.pop %v527
        %v532 = vmul.f32 %v507, %v528
        %v533 = vmul.f32 %v507, %v529
        %v534 = vmul.f32 %v507, %v530
        %v535 = vmul.f32 %v507, %v531
        %v536 = vmul.f32 %v354, %v532
        %v537 = vmul.f32 %v355, %v533
        %v538 = vmul.f32 %v356, %v534
        %v539 = vmul.f32 %v357, %v535
        %v540 = vld [vmem:[%s3] sm:$0xff]
        %v541 = vld [vmem:[%s3 + $0x8] sm:$0xff]
        %v542 = vld [vmem:[%s3 + $0x10] sm:$0xff]
        %v543 = vld [vmem:[%s3 + $0x18] sm:$0xff]
        %v544 = vld [vmem:[%s3 + $0x20] sm:$0xff]
        %v545 = vld [vmem:[%s3 + $0x28] sm:$0xff]
        %v546 = vld [vmem:[%s3 + $0x30] sm:$0xff]
        %v547 = vld [vmem:[%s3 + $0x38] sm:$0xff]
        %v548 = vld [vmem:[%s3 + $0x40] sm:$0xff]
        %v549 = vld [vmem:[%s3 + $0x48] sm:$0xff]
        %v550 = vld [vmem:[%s3 + $0x50] sm:$0xff]
        %v551 = vld [vmem:[%s3 + $0x58] sm:$0xff]
        %v552 = vld [vmem:[%s3 + $0x60] sm:$0xff]
        %v553 = vld [vmem:[%s3 + $0x68] sm:$0xff]
        %v554 = vld [vmem:[%s3 + $0x70] sm:$0xff]
        %v555 = vld [vmem:[%s3 + $0x78] sm:$0xff]
        %v556 = vld [vmem:[%s3 + $0x80] sm:$0xff]
        %v557 = vld [vmem:[%s3 + $0x88] sm:$0xff]
        %v558 = vld [vmem:[%s3 + $0x90] sm:$0xff]
        %v559 = vld [vmem:[%s3 + $0x98] sm:$0xff]
        %v560 = vld [vmem:[%s3 + $0xa0] sm:$0xff]
        %v561 = vld [vmem:[%s3 + $0xa8] sm:$0xff]
        %v562 = vld [vmem:[%s3 + $0xb0] sm:$0xff]
        %v563 = vld [vmem:[%s3 + $0xb8] sm:$0xff]
        %v564 = vld [vmem:[%s3 + $0xc0] sm:$0xff]
        %v565 = vld [vmem:[%s3 + $0xc8] sm:$0xff]
        %v566 = vld [vmem:[%s3 + $0xd0] sm:$0xff]
        %v567 = vld [vmem:[%s3 + $0xd8] sm:$0xff]
        %v568 = vld [vmem:[%s3 + $0xe0] sm:$0xff]
        %v569 = vld [vmem:[%s3 + $0xe8] sm:$0xff]
        %v570 = vld [vmem:[%s3 + $0xf0] sm:$0xff]
        %v571 = vld [vmem:[%s3 + $0xf8] sm:$0xff]
        %572 = vmatprep.subr.mxu0 %v541
        %573 = vmatpush1.msra.mxu0 %v540
        %574 = vmatprep.subr.mxu0 %v543
        %575 = vmatpush1.msra.mxu0 %v542
        %576 = vmatprep.subr.mxu0 %v545
        %577 = vmatpush1.msra.mxu0 %v544
        %578 = vmatprep.subr.mxu0 %v547
        %579 = vmatpush1.msra.mxu0 %v546
        %580 = vmatprep.subr.mxu0 %v549
        %581 = vmatpush1.msra.mxu0 %v548
        %582 = vmatprep.subr.mxu0 %v551
        %583 = vmatpush1.msra.mxu0 %v550
        %584 = vmatprep.subr.mxu0 %v553
        %585 = vmatpush1.msra.mxu0 %v552
        %586 = vmatprep.subr.mxu0 %v555
        %587 = vmatpush1.msra.mxu0 %v554
        %588 = vmatprep.subr.mxu0 %v557
        %589 = vmatpush1.msra.mxu0 %v556
        %590 = vmatprep.subr.mxu0 %v559
        %591 = vmatpush1.msra.mxu0 %v558
        %592 = vmatprep.subr.mxu0 %v561
        %593 = vmatpush1.msra.mxu0 %v560
        %594 = vmatprep.subr.mxu0 %v563
        %595 = vmatpush1.msra.mxu0 %v562
        %596 = vmatprep.subr.mxu0 %v565
        %597 = vmatpush1.msra.mxu0 %v564
        %598 = vmatprep.subr.mxu0 %v567
        %599 = vmatpush1.msra.mxu0 %v566
        %600 = vmatprep.subr.mxu0 %v569
        %601 = vmatpush1.msra.mxu0 %v568
        %602 = vmatprep.subr.mxu0 %v571
        %603 = vmatpush1.msra.mxu0 %v570
        %604 = vmatprep.subr.mxu0 0.0
        %605 = vmatpush1.msra.mxu0 0.0
        %606 = vmatprep.subr.mxu0 0.0
        %607 = vmatpush1.msra.mxu0 0.0
        %608 = vmatprep.subr.mxu0 0.0
        %609 = vmatpush1.msra.mxu0 0.0
        %610 = vmatprep.subr.mxu0 0.0
        %611 = vmatpush1.msra.mxu0 0.0
        %612 = vmatprep.subr.mxu0 0.0
        %613 = vmatpush1.msra.mxu0 0.0
        %614 = vmatprep.subr.mxu0 0.0
        %615 = vmatpush1.msra.mxu0 0.0
        %616 = vmatprep.subr.mxu0 0.0
        %617 = vmatpush1.msra.mxu0 0.0
        %618 = vmatprep.subr.mxu0 0.0
        %619 = vmatpush1.msra.mxu0 0.0
        %620 = vmatprep.subr.mxu0 0.0
        %621 = vmatpush1.msra.mxu0 0.0
        %622 = vmatprep.subr.mxu0 0.0
        %623 = vmatpush1.msra.mxu0 0.0
        %624 = vmatprep.subr.mxu0 0.0
        %625 = vmatpush1.msra.mxu0 0.0
        %626 = vmatprep.subr.mxu0 0.0
        %627 = vmatpush1.msra.mxu0 0.0
        %628 = vmatprep.subr.mxu0 0.0
        %629 = vmatpush1.msra.mxu0 0.0
        %630 = vmatprep.subr.mxu0 0.0
        %631 = vmatpush1.msra.mxu0 0.0
        %632 = vmatprep.subr.mxu0 0.0
        %633 = vmatpush1.msra.mxu0 0.0
        %634 = vmatprep.subr.mxu0 0.0
        %635 = vmatpush1.msra.mxu0 0.0
        %636 = vmatprep.mubr.f32.mxu0 0.0
        %637 = vmatmul.mubr.f32.gmra.mrb[0].mxu0 %v536
        %v638 = vpop.f32.mrb[0].mxu0
        %v639 = vadd.f32 0.0, %v638
        %v640 = vpop.f32.mrb[0].mxu0
        %v641 = vadd.f32 0.0, %v640
        %642 = vmatprep.mubr.f32.mxu0 0.0
        %643 = vmatmul.mubr.f32.gmra.mrb[0].mxu0 %v537
        %v644 = vpop.f32.mrb[0].mxu0
        %v645 = vadd.f32 0.0, %v644
        %v646 = vpop.f32.mrb[0].mxu0
        %v647 = vadd.f32 0.0, %v646
        %648 = vmatprep.mubr.f32.mxu0 0.0
        %649 = vmatmul.mubr.f32.gmra.mrb[0].mxu0 %v538
        %v650 = vpop.f32.mrb[0].mxu0
        %v651 = vadd.f32 0.0, %v650
        %v652 = vpop.f32.mrb[0].mxu0
        %v653 = vadd.f32 0.0, %v652
        %654 = vmatprep.mubr.f32.mxu0 0.0
        %655 = vmatmul.mubr.f32.gmra.mrb[0].mxu0 %v539
        %v656 = vpop.f32.mrb[0].mxu0
        %v657 = vadd.f32 0.0, %v656
        %v658 = vpop.f32.mrb[0].mxu0
        %v659 = vadd.f32 0.0, %v658
        %660 = vdwg.mxu0
        %v661 = vld [vmem:[#allocation7] sm:$0xff]
        %v662 = vld [vmem:[#allocation7 + $0x8] sm:$0xff]
        %v663 = vld [vmem:[#allocation7 + $0x10] sm:$0xff]
        %v664 = vld [vmem:[#allocation7 + $0x18] sm:$0xff]
        %v665 = vld [vmem:[#allocation7 + $0x20] sm:$0xff]
        %v666 = vld [vmem:[#allocation7 + $0x28] sm:$0xff]
        %v667 = vld [vmem:[#allocation7 + $0x30] sm:$0xff]
        %v668 = vld [vmem:[#allocation7 + $0x38] sm:$0xff]
        %v669 = vld [vmem:[#allocation7 + $0x40] sm:$0xff]
        %v670 = vld [vmem:[#allocation7 + $0x48] sm:$0xff]
        %v671 = vld [vmem:[#allocation7 + $0x50] sm:$0xff]
        %v672 = vld [vmem:[#allocation7 + $0x58] sm:$0xff]
        %v673 = vld [vmem:[#allocation7 + $0x60] sm:$0xff]
        %v674 = vld [vmem:[#allocation7 + $0x68] sm:$0xff]
        %v675 = vld [vmem:[#allocation7 + $0x70] sm:$0xff]
        %v676 = vld [vmem:[#allocation7 + $0x78] sm:$0xff]
        %v677 = vld [vmem:[#allocation7 + $0x80] sm:$0xff]
        %v678 = vld [vmem:[#allocation7 + $0x88] sm:$0xff]
        %v679 = vld [vmem:[#allocation7 + $0x90] sm:$0xff]
        %v680 = vld [vmem:[#allocation7 + $0x98] sm:$0xff]
        %v681 = vld [vmem:[#allocation7 + $0xa0] sm:$0xff]
        %v682 = vld [vmem:[#allocation7 + $0xa8] sm:$0xff]
        %v683 = vld [vmem:[#allocation7 + $0xb0] sm:$0xff]
        %v684 = vld [vmem:[#allocation7 + $0xb8] sm:$0xff]
        %v685 = vld [vmem:[#allocation7 + $0xc0] sm:$0xff]
        %v686 = vld [vmem:[#allocation7 + $0xc8] sm:$0xff]
        %v687 = vld [vmem:[#allocation7 + $0xd0] sm:$0xff]
        %v688 = vld [vmem:[#allocation7 + $0xd8] sm:$0xff]
        %v689 = vld [vmem:[#allocation7 + $0xe0] sm:$0xff]
        %v690 = vld [vmem:[#allocation7 + $0xe8] sm:$0xff]
        %v691 = vld [vmem:[#allocation7 + $0xf0] sm:$0xff]
        %v692 = vld [vmem:[#allocation7 + $0xf8] sm:$0xff]
        %693 = vmatprep.subr.mxu0 %v662
        %694 = vmatpush1.msra.mxu0 %v661
        %695 = vmatprep.subr.mxu0 %v664
        %696 = vmatpush1.msra.mxu0 %v663
        %697 = vmatprep.subr.mxu0 %v666
        %698 = vmatpush1.msra.mxu0 %v665
        %699 = vmatprep.subr.mxu0 %v668
        %700 = vmatpush1.msra.mxu0 %v667
        %701 = vmatprep.subr.mxu0 %v670
        %702 = vmatpush1.msra.mxu0 %v669
        %703 = vmatprep.subr.mxu0 %v672
        %704 = vmatpush1.msra.mxu0 %v671
        %705 = vmatprep.subr.mxu0 %v674
        %706 = vmatpush1.msra.mxu0 %v673
        %707 = vmatprep.subr.mxu0 %v676
        %708 = vmatpush1.msra.mxu0 %v675
        %709 = vmatprep.subr.mxu0 %v678
        %710 = vmatpush1.msra.mxu0 %v677
        %711 = vmatprep.subr.mxu0 %v680
        %712 = vmatpush1.msra.mxu0 %v679
        %713 = vmatprep.subr.mxu0 %v682
        %714 = vmatpush1.msra.mxu0 %v681
        %715 = vmatprep.subr.mxu0 %v684
        %716 = vmatpush1.msra.mxu0 %v683
        %717 = vmatprep.subr.mxu0 %v686
        %718 = vmatpush1.msra.mxu0 %v685
        %719 = vmatprep.subr.mxu0 %v688
        %720 = vmatpush1.msra.mxu0 %v687
        %721 = vmatprep.subr.mxu0 %v690
        %722 = vmatpush1.msra.mxu0 %v689
        %723 = vmatprep.subr.mxu0 %v692
        %724 = vmatpush1.msra.mxu0 %v691
        %725 = vmatprep.subr.mxu0 0.0
        %726 = vmatpush1.msra.mxu0 0.0
        %727 = vmatprep.subr.mxu0 0.0
        %728 = vmatpush1.msra.mxu0 0.0
        %729 = vmatprep.subr.mxu0 0.0
        %730 = vmatpush1.msra.mxu0 0.0
        %731 = vmatprep.subr.mxu0 0.0
        %732 = vmatpush1.msra.mxu0 0.0
        %733 = vmatprep.subr.mxu0 0.0
        %734 = vmatpush1.msra.mxu0 0.0
        %735 = vmatprep.subr.mxu0 0.0
        %736 = vmatpush1.msra.mxu0 0.0
        %737 = vmatprep.subr.mxu0 0.0
        %738 = vmatpush1.msra.mxu0 0.0
        %739 = vmatprep.subr.mxu0 0.0
        %740 = vmatpush1.msra.mxu0 0.0
        %741 = vmatprep.subr.mxu0 0.0
        %742 = vmatpush1.msra.mxu0 0.0
        %743 = vmatprep.subr.mxu0 0.0
        %744 = vmatpush1.msra.mxu0 0.0
        %745 = vmatprep.subr.mxu0 0.0
        %746 = vmatpush1.msra.mxu0 0.0
        %747 = vmatprep.subr.mxu0 0.0
        %748 = vmatpush1.msra.mxu0 0.0
        %749 = vmatprep.subr.mxu0 0.0
        %750 = vmatpush1.msra.mxu0 0.0
        %751 = vmatprep.subr.mxu0 0.0
        %752 = vmatpush1.msra.mxu0 0.0
        %753 = vmatprep.subr.mxu0 0.0
        %754 = vmatpush1.msra.mxu0 0.0
        %755 = vmatprep.subr.mxu0 0.0
        %756 = vmatpush1.msra.mxu0 0.0
        %757 = vmatprep.mubr.f32.mxu0 0.0
        %758 = vmatmul.mubr.f32.gmra.mrb[0].mxu0 %v536
        %v759 = vpop.f32.mrb[0].mxu0
        %v760 = vadd.f32 0.0, %v759
        %v761 = vpop.f32.mrb[0].mxu0
        %v762 = vadd.f32 0.0, %v761
        %763 = vmatprep.mubr.f32.mxu0 0.0
        %764 = vmatmul.mubr.f32.gmra.mrb[0].mxu0 %v537
        %v765 = vpop.f32.mrb[0].mxu0
        %v766 = vadd.f32 0.0, %v765
        %v767 = vpop.f32.mrb[0].mxu0
        %v768 = vadd.f32 0.0, %v767
        %769 = vmatprep.mubr.f32.mxu0 0.0
        %770 = vmatmul.mubr.f32.gmra.mrb[0].mxu0 %v538
        %v771 = vpop.f32.mrb[0].mxu0
        %v772 = vadd.f32 0.0, %v771
        %v773 = vpop.f32.mrb[0].mxu0
        %v774 = vadd.f32 0.0, %v773
        %775 = vmatprep.mubr.f32.mxu0 0.0
        %776 = vmatmul.mubr.f32.gmra.mrb[0].mxu0 %v539
        %v777 = vpop.f32.mrb[0].mxu0
        %v778 = vadd.f32 0.0, %v777
        %v779 = vpop.f32.mrb[0].mxu0
        %v780 = vadd.f32 0.0, %v779
        %781 = vdwg.mxu0
        %v782 = vmul.f32 %v639, 0.5
        %v783 = vmul.f32 %v641, 0.5
        %v784 = vmul.f32 %v645, 0.5
        %v785 = vmul.f32 %v647, 0.5
        %v786 = vmul.f32 %v651, 0.5
        %v787 = vmul.f32 %v653, 0.5
        %v788 = vmul.f32 %v657, 0.5
        %v789 = vmul.f32 %v659, 0.5
        %v790 = vmul.f32 %v760, 0.70710677
        %v791 = vmul.f32 %v762, 0.70710677
        %v792 = vmul.f32 %v766, 0.70710677
        %v793 = vmul.f32 %v768, 0.70710677
        %v794 = vmul.f32 %v772, 0.70710677
        %v795 = vmul.f32 %v774, 0.70710677
        %v796 = vmul.f32 %v778, 0.70710677
        %v797 = vmul.f32 %v780, 0.70710677
        %v798 = verf.f32.pop %v790
        %v799 = verf.f32.pop %v791
        %v800 = verf.f32.pop %v792
        %v801 = verf.f32.pop %v793
        %v802 = verf.f32.pop %v794
        %v803 = verf.f32.pop %v795
        %v804 = verf.f32.pop %v796
        %v805 = verf.f32.pop %v797
        %v806 = vadd.f32 %v798, 1.0
        %v807 = vadd.f32 %v799, 1.0
        %v808 = vadd.f32 %v800, 1.0
        %v809 = vadd.f32 %v801, 1.0
        %v810 = vadd.f32 %v802, 1.0
        %v811 = vadd.f32 %v803, 1.0
        %v812 = vadd.f32 %v804, 1.0
        %v813 = vadd.f32 %v805, 1.0
        %v814 = vmul.f32 %v782, %v806
        %v815 = vmul.f32 %v783, %v807
        %v816 = vmul.f32 %v784, %v808
        %v817 = vmul.f32 %v785, %v809
        %v818 = vmul.f32 %v786, %v810
        %v819 = vmul.f32 %v787, %v811
        %v820 = vmul.f32 %v788, %v812
        %v821 = vmul.f32 %v789, %v813
        %v822 = vld [vmem:[#allocation8] sm:$0xff]
        %v823 = vld [vmem:[#allocation8 + $0x8] sm:$0xff]
        %v824 = vld [vmem:[#allocation8 + $0x10] sm:$0xff]
        %v825 = vld [vmem:[#allocation8 + $0x18] sm:$0xff]
        %v826 = vld [vmem:[#allocation8 + $0x20] sm:$0xff]
        %v827 = vld [vmem:[#allocation8 + $0x28] sm:$0xff]
        %v828 = vld [vmem:[#allocation8 + $0x30] sm:$0xff]
        %v829 = vld [vmem:[#allocation8 + $0x38] sm:$0xff]
        %v830 = vld [vmem:[#allocation8 + $0x40] sm:$0xff]
        %v831 = vld [vmem:[#allocation8 + $0x48] sm:$0xff]
        %v832 = vld [vmem:[#allocation8 + $0x50] sm:$0xff]
        %v833 = vld [vmem:[#allocation8 + $0x58] sm:$0xff]
        %v834 = vld [vmem:[#allocation8 + $0x60] sm:$0xff]
        %v835 = vld [vmem:[#allocation8 + $0x68] sm:$0xff]
        %v836 = vld [vmem:[#allocation8 + $0x70] sm:$0xff]
        %v837 = vld [vmem:[#allocation8 + $0x78] sm:$0xff]
        %v838 = vld [vmem:[#allocation8 + $0x80] sm:$0xff]
        %v839 = vld [vmem:[#allocation8 + $0x88] sm:$0xff]
        %v840 = vld [vmem:[#allocation8 + $0x90] sm:$0xff]
        %v841 = vld [vmem:[#allocation8 + $0x98] sm:$0xff]
        %v842 = vld [vmem:[#allocation8 + $0xa0] sm:$0xff]
        %v843 = vld [vmem:[#allocation8 + $0xa8] sm:$0xff]
        %v844 = vld [vmem:[#allocation8 + $0xb0] sm:$0xff]
        %v845 = vld [vmem:[#allocation8 + $0xb8] sm:$0xff]
        %v846 = vld [vmem:[#allocation8 + $0xc0] sm:$0xff]
        %v847 = vld [vmem:[#allocation8 + $0xc8] sm:$0xff]
        %v848 = vld [vmem:[#allocation8 + $0xd0] sm:$0xff]
        %v849 = vld [vmem:[#allocation8 + $0xd8] sm:$0xff]
        %v850 = vld [vmem:[#allocation8 + $0xe0] sm:$0xff]
        %v851 = vld [vmem:[#allocation8 + $0xe8] sm:$0xff]
        %v852 = vld [vmem:[#allocation8 + $0xf0] sm:$0xff]
        %v853 = vld [vmem:[#allocation8 + $0xf8] sm:$0xff]
        %854 = vmatprep.subr.mxu0 0.0
        %855 = vmatpush1.msra.mxu0 %v822
        %856 = vmatprep.subr.mxu0 0.0
        %857 = vmatpush1.msra.mxu0 %v823
        %858 = vmatprep.subr.mxu0 0.0
        %859 = vmatpush1.msra.mxu0 %v824
        %860 = vmatprep.subr.mxu0 0.0
        %861 = vmatpush1.msra.mxu0 %v825
        %862 = vmatprep.subr.mxu0 0.0
        %863 = vmatpush1.msra.mxu0 %v826
        %864 = vmatprep.subr.mxu0 0.0
        %865 = vmatpush1.msra.mxu0 %v827
        %866 = vmatprep.subr.mxu0 0.0
        %867 = vmatpush1.msra.mxu0 %v828
        %868 = vmatprep.subr.mxu0 0.0
        %869 = vmatpush1.msra.mxu0 %v829
        %870 = vmatprep.subr.mxu0 0.0
        %871 = vmatpush1.msra.mxu0 %v830
        %872 = vmatprep.subr.mxu0 0.0
        %873 = vmatpush1.msra.mxu0 %v831
        %874 = vmatprep.subr.mxu0 0.0
        %875 = vmatpush1.msra.mxu0 %v832
        %876 = vmatprep.subr.mxu0 0.0
        %877 = vmatpush1.msra.mxu0 %v833
        %878 = vmatprep.subr.mxu0 0.0
        %879 = vmatpush1.msra.mxu0 %v834
        %880 = vmatprep.subr.mxu0 0.0
        %881 = vmatpush1.msra.mxu0 %v835
        %882 = vmatprep.subr.mxu0 0.0
        %883 = vmatpush1.msra.mxu0 %v836
        %884 = vmatprep.subr.mxu0 0.0
        %885 = vmatpush1.msra.mxu0 %v837
        %886 = vmatprep.subr.mxu0 0.0
        %887 = vmatpush1.msra.mxu0 %v838
        %888 = vmatprep.subr.mxu0 0.0
        %889 = vmatpush1.msra.mxu0 %v839
        %890 = vmatprep.subr.mxu0 0.0
        %891 = vmatpush1.msra.mxu0 %v840
        %892 = vmatprep.subr.mxu0 0.0
        %893 = vmatpush1.msra.mxu0 %v841
        %894 = vmatprep.subr.mxu0 0.0
        %895 = vmatpush1.msra.mxu0 %v842
        %896 = vmatprep.subr.mxu0 0.0
        %897 = vmatpush1.msra.mxu0 %v843
        %898 = vmatprep.subr.mxu0 0.0
        %899 = vmatpush1.msra.mxu0 %v844
        %900 = vmatprep.subr.mxu0 0.0
        %901 = vmatpush1.msra.mxu0 %v845
        %902 = vmatprep.subr.mxu0 0.0
        %903 = vmatpush1.msra.mxu0 %v846
        %904 = vmatprep.subr.mxu0 0.0
        %905 = vmatpush1.msra.mxu0 %v847
        %906 = vmatprep.subr.mxu0 0.0
        %907 = vmatpush1.msra.mxu0 %v848
        %908 = vmatprep.subr.mxu0 0.0
        %909 = vmatpush1.msra.mxu0 %v849
        %910 = vmatprep.subr.mxu0 0.0
        %911 = vmatpush1.msra.mxu0 %v850
        %912 = vmatprep.subr.mxu0 0.0
        %913 = vmatpush1.msra.mxu0 %v851
        %914 = vmatprep.subr.mxu0 0.0
        %915 = vmatpush1.msra.mxu0 %v852
        %916 = vmatprep.subr.mxu0 0.0
        %917 = vmatpush1.msra.mxu0 %v853
        %918 = vmatprep.mubr.f32.mxu0 %v815
        %919 = vmatmul.mubr.f32.gmra.mrb[0].mxu0 %v814
        %v920 = vpop.f32.mrb[0].mxu0
        %v921 = vadd.f32 %v354, %v920
        %v922 = vpop.f32.mrb[0].mxu0
        %923 = vmatprep.mubr.f32.mxu0 %v817
        %924 = vmatmul.mubr.f32.gmra.mrb[0].mxu0 %v816
        %v925 = vpop.f32.mrb[0].mxu0
        %v926 = vadd.f32 %v355, %v925
        %v927 = vpop.f32.mrb[0].mxu0
        %928 = vmatprep.mubr.f32.mxu0 %v819
        %929 = vmatmul.mubr.f32.gmra.mrb[0].mxu0 %v818
        %v930 = vpop.f32.mrb[0].mxu0
        %v931 = vadd.f32 %v356, %v930
        %v932 = vpop.f32.mrb[0].mxu0
        %933 = vmatprep.mubr.f32.mxu0 %v821
        %934 = vmatmul.mubr.f32.gmra.mrb[0].mxu0 %v820
        %v935 = vpop.f32.mrb[0].mxu0
        %v936 = vadd.f32 %v357, %v935
        %v937 = vpop.f32.mrb[0].mxu0
        %938 = vdwg.mxu0
        %939 = vst [vmem:[%s346] sm:$0xff] %v921
        %940 = vst [vmem:[%s346 + $0x8] sm:$0xff] %v926
        %941 = vst [vmem:[%s346 + $0x10] sm:$0xff] %v931
        %942 = vst [vmem:[%s346 + $0x18] sm:$0xff] %v936
        %s943 = sand.u32 %s185, 1
        %s944 = scalar_lea.sflag [#allocation4], %s943
        %s945 = sand.u32 %s185, 1
        %s946 = smul.addr %s945, 32
        %s947 = scalar_lea.vmem [#allocation10], %s946
        // Predicated region
        $region61: #{tpu_custom_call.1} parent=43 // pred_check
          %p948 = pneg %p195
        $region62: #{tpu_custom_call.1} parent=43 // pred_check_branch
          %950 = sbr.rel (%p948) target = $region64
        $region63: #{tpu_custom_call.1} parent=43 // pred_region
          %s951 = smul.u32 4, %s30
          %s953 = ssub.s32 512, 512
          %954 = vsyncadd %s944, %s953
          %s955 = smul.addr %s29, 4
          %s956 = sadd.s32 %s951, %s955
          %s957 = smul.addr %s956, 128
          %s958 = scalar_lea.hbm %s6, %s957
          %s959 = sshll.u32 %s947, 4
          %s960 = int_to_ptr.vmem [resolvable:$true] %s959
          %965 = dma.vmem_to_hbm [thread:$0]  %s960, 512, %s958, %s944, 128, 128, 8
        $region64: #{tpu_custom_call.1} parent=43 // pred_fallthru
          _
      $region44: #{tpu_custom_call.1} parent=5 // pred_fallthru
        _
      %p966 = scmp.le.s32.totalorder 2, %s20
      // Predicated region
      $region65: #{tpu_custom_call.1} parent=5 // pred_check
        %p967 = pneg %p966
      $region66: #{tpu_custom_call.1} parent=5 // pred_check_branch
        %969 = sbr.rel (%p967) target = $region68
      $region67: #{tpu_custom_call.1} parent=5 // pred_region
        %s970 = ssub.s32 %s20, 2
        // Predicated region
        $region69: #{tpu_custom_call.1} parent=67 // pred_check
          %p971 = pneg %p201
        $region70: #{tpu_custom_call.1} parent=67 // pred_check_branch
          %973 = sbr.rel (%p971) target = $region72
        $region71: #{tpu_custom_call.1} parent=67 // pred_region
          %s974 = sand.u32 %s186, 1
          %s975 = scalar_lea.sflag [#allocation4], %s974
          %s976 = sand.u32 %s186, 1
          %s977 = smul.addr %s976, 32
          %s978 = scalar_lea.vmem [#allocation10], %s977
          %979 = dma.done %s975, 512
        $region72: #{tpu_custom_call.1} parent=67 // pred_fallthru
          _
      $region68: #{tpu_custom_call.1} parent=5 // pred_fallthru
        _
    $region6: #{tpu_custom_call.1} parent=1 // loop_footer
      %s24 = sadd.s32 1, %s20
    $region7: #{tpu_custom_call.1} parent=1 // loop_footer_branch
      %19 = sbr.rel target = $region3
    $region8: #{tpu_custom_call.1} parent=1 // loop_exit
      _
    %980 = vsyncpa [#allocation3], 1
    %s981 = scalar_lea.sflag [#allocation3], 1
    %982 = vsyncpa %s981, 1
    %983 = vsyncpa [#allocation6], 1
    %984 = vsyncpa [#allocation9], 1
    %985 = vsyncpa [#allocation4], 1
    %s986 = scalar_lea.sflag [#allocation4], 1
    %987 = vsyncpa %s986, 1

</llo_original>
